<compile_context>
chip_gen: v5e
topology: v5e:2x2
jax: 0.10.0
libtpu: 0.0.40
codegen_flags: <defaults>
</compile_context>

<pallas_src>
import jax
import jax.numpy as jnp
from jax import lax
from jax.experimental import pallas as pl
from jax.experimental.pallas import tpu as pltpu


def _round_up(x, m):
    return ((x + m - 1) // m) * m


# ----------------------------- Pallas kernel ------------------------------ #
def lorentz_loss_kernel(ti_hi_ref, ti_lo_ref, tk_hi_ref, tk_lo_ref,
                        i_ref, ks_ref, loss_ref):
    D, V = ti_hi_ref.shape          # sign-folded table^T (I side), VMEM-resident
    N, TB = ks_ref.shape            # Ks^T tile, batch on the lane axis

    ti_hi = ti_hi_ref[...]          # (D, V) bf16-exact part
    ti_lo = ti_lo_ref[...]          # (D, V) f32 residual
    tk_hi = tk_hi_ref[...]          # (D, V) bf16-exact part (Ks side)
    tk_lo = tk_lo_ref[...]          # (D, V) f32 residual

    iota_v = lax.broadcasted_iota(jnp.int32, (V, TB), 0)   # table row id / sublane

    # In-kernel gather of ui = table[I] via one-hot matmul on the MXU.
    # one-hot entries (0/1) and the hi table are bf16-exact, so hi-pass is
    # exact; the lo-pass restores full f32 accuracy of the gathered rows.
    oh_i = (iota_v == i_ref[...]).astype(jnp.float32)                    # (V, TB)
    ui = (jnp.dot(ti_hi, oh_i, preferred_element_type=jnp.float32)
          + jnp.dot(ti_lo, oh_i, preferred_element_type=jnp.float32))    # (D, TB)

    ks = ks_ref[...]                                                     # (N, TB)

    d0 = jnp.zeros((1, TB), jnp.float32)
    sum_exp = jnp.zeros((1, TB), jnp.float32)
    for n in range(N):                      # static unroll, N is small
        oh_n = (iota_v == ks[n:n + 1, :]).astype(jnp.float32)            # (V, TB)
        uk = (jnp.dot(tk_hi, oh_n, preferred_element_type=jnp.float32)
              + jnp.dot(tk_lo, oh_n, preferred_element_type=jnp.float32))  # (D, TB)
        # ti already carries the (+, -, ..., -) Lorentz signs, so this
        # sublane reduction is  -<ui, uk>_L  directly.
        d = jnp.sum(ui * uk, axis=0, keepdims=True)                      # (1, TB)
        d = jnp.where(d <= 1.0, jnp.float32(1.0 + 1e-6), d)
        d = -jnp.log(d + jnp.sqrt(d * d - 1.0))                          # -arcosh
        sum_exp = sum_exp + jnp.exp(d)
        if n == 0:
            d0 = d                          # the `j` document distance

    # loss = -(d0 - log(sum_n exp(d_n) + 1e-6))
    loss_ref[...] = jnp.log(sum_exp + 1e-6) - d0


# ------------------------------- wrapper ----------------------------------- #
def lorentz_forward(table, I, Ks, *, base_tb=1024):
    """table: (n_items+1, D) f32, I: (B,) int, Ks: (B, N) int -> (B,) f32."""
    B, N = Ks.shape
    V, D = table.shape
    table = table.astype(jnp.float32)
    I = I.astype(jnp.int32)
    Ks = Ks.astype(jnp.int32)

    # Batch tile: lane-dense multiple of 128, grown toward `base_tb` but
    # bounded so the (V, TB) one-hot intermediates stay in a small VMEM budget
    # (safe for v7x's 64 MiB/TC even after double-buffering the index tiles).
    v_sub = _round_up(max(V, 8), 8)
    tb_cap = max(128, ((6 << 20) // (3 * v_sub * 4)) // 128 * 128)
    TB = max(128, min(base_tb, tb_cap, _round_up(B, 128)))
    Bp = _round_up(B, TB)

    # Pad batch with index 0 (the padding row).  Padded lanes hit the
    # dists<=1 clamp (no NaNs) and are sliced off before returning.
    if Bp != B:
        I = jnp.pad(I, (0, Bp - B))
        Ks = jnp.pad(Ks, ((0, Bp - B), (0, 0)))

    i2d = I.reshape(1, Bp)                      # batch on the lane axis
    ks_t = Ks.T                                 # (N, Bp), batch on the lane axis

    # VMEM-resident gather tables, transposed so D sits on sublanes.
    # Lorentz signs folded into the I-side table: +x0, -x1, ..., -x_{D-1}.
    sgn = jnp.where(jnp.arange(D) == 0, 1.0, -1.0).astype(jnp.float32)
    t_i = (table * sgn[None, :]).T              # (D, V)
    t_k = table.T                               # (D, V)

    def _split(t):                              # exact-gather hi/lo split
        hi = t.astype(jnp.bfloat16).astype(jnp.float32)
        return hi, t - hi

    ti_hi, ti_lo = _split(t_i)
    tk_hi, tk_lo = _split(t_k)

    # Raise the scoped VMEM limit (v5e default is 16 MiB) but stay <= 64 MiB
    # so the same request is valid on v7x's 64 MiB/TC.
    d_sub = _round_up(max(D, 8), 8)
    v_lane = _round_up(V, 128)
    est = 4 * TB * (4 * (N + 2) + 4 * v_sub + 6 * d_sub)   # index tiles + scratch
    est += 4 * 4 * d_sub * v_lane * 2                      # resident tables
    vmem_limit = int(min(64 << 20, max(32 << 20, 2 * est)))

    grid = (Bp // TB,)
    loss2d = pl.pallas_call(
        lorentz_loss_kernel,
        out_shape=jax.ShapeDtypeStruct((1, Bp), jnp.float32),
        grid_spec=pltpu.PrefetchScalarGridSpec(
            num_scalar_prefetch=0,
            grid=grid,
            in_specs=[
                pl.BlockSpec((D, V), lambda i: (0, 0)),    # ti_hi (resident)
                pl.BlockSpec((D, V), lambda i: (0, 0)),    # ti_lo (resident)
                pl.BlockSpec((D, V), lambda i: (0, 0)),    # tk_hi (resident)
                pl.BlockSpec((D, V), lambda i: (0, 0)),    # tk_lo (resident)
                pl.BlockSpec((1, TB), lambda i: (0, i)),   # I     (pipelined)
                pl.BlockSpec((N, TB), lambda i: (0, i)),   # Ks^T  (pipelined)
            ],
            out_specs=pl.BlockSpec((1, TB), lambda i: (0, i)),
        ),
        compiler_params=pltpu.CompilerParams(
            dimension_semantics=("parallel",),
            vmem_limit_bytes=vmem_limit),
    )(ti_hi, ti_lo, tk_hi, tk_lo, i2d, ks_t)

    return loss2d[0, :B]


# ------------------------- parameter initialization ------------------------ #
def init_lorentz_table(key, n_items, dim, init_range=0.001):
    """Mirrors Lorentz.__init__: uniform init, row0 = 5, renorm, set dim0."""
    w = jax.random.uniform(
        key, (n_items + 1, dim), dtype=jnp.float32,
        minval=-init_range, maxval=init_range)
    w = w.at[0].set(5.0)
    # torch.renorm(p=2, dim=0, maxnorm=100): scale rows whose L2 norm > 100
    norms = jnp.sqrt(jnp.sum(w * w, axis=1, keepdims=True))
    w = w * jnp.where(norms > 100.0, 100.0 / (norms + 1e-7), 1.0)
    # dim0 = sqrt(1 + sum_{d>=1} x_d^2)
    dim0 = jnp.sqrt(1.0 + jnp.sum(w[:, 1:] ** 2, axis=1))
    w = w.at[:, 0].set(dim0)
    return w


# --------------------------- pure-JAX reference ---------------------------- #
def lorentz_forward_ref(table, I, Ks):
    B, N = Ks.shape
    D = table.shape[1]
    ui = jnp.broadcast_to(table[I][:, None, :], (B, N, D)).reshape(B * N, D)
    uks = table[Ks].reshape(B * N, D)
    m = ui * uks
    lsp = jnp.sum(m[:, 1:], axis=1) - m[:, 0]
    d = -lsp
    d = jnp.where(d <= 1.0, 1.0 + 1e-6, d)
    d = -jnp.log(d + jnp.sqrt(d * d - 1.0))
    d = d.reshape(B, N)
    return -(d[:, 0] - jnp.log(jnp.sum(jnp.exp(d), axis=1) + 1e-6))


if __name__ == "__main__":
    key = jax.random.PRNGKey(0)
    k_tab, k_i, k_ks, k_i2, k_ks2 = jax.random.split(key, 5)

    n_items, dim = 32, 8          # table: (33, 8)
    # Larger init_range keeps pairwise Lorentz distances away from the arcosh
    # singularity at 1 (ill-conditioned in f32); I and Ks ranges are disjoint
    # for the same reason.
    table = init_lorentz_table(k_tab, n_items, dim, init_range=1.0)

    # ---- small case: single grid step (B padded to one 128-lane tile) ----
    B, N = 4, 4
    I = jax.random.randint(k_i, (B,), 1, n_items // 2 + 1, dtype=jnp.int32)
    Ks = jax.random.randint(k_ks, (B, N), n_items // 2 + 1, n_items + 1,
                            dtype=jnp.int32)

    loss = jax.block_until_ready(lorentz_forward(table, I, Ks))
    ref = lorentz_forward_ref(table, I, Ks)
    assert loss.shape == (B,)
    assert bool(jnp.all(jnp.isfinite(loss)))
    assert jnp.allclose(loss, ref, atol=5e-4, rtol=5e-4), (loss, ref)

    # ---- tiled case: exercises batch padding (B=200 -> 256 lanes) ----
    B2, N2 = 200, 4
    I2 = jax.random.randint(k_i2, (B2,), 1, n_items // 2 + 1, dtype=jnp.int32)
    Ks2 = jax.random.randint(k_ks2, (B2, N2), n_items // 2 + 1, n_items + 1,
                             dtype=jnp.int32)

    loss2 = jax.block_until_ready(lorentz_forward(table, I2, Ks2))
    ref2 = lorentz_forward_ref(table, I2, Ks2)
    assert loss2.shape == (B2,)
    assert bool(jnp.all(jnp.isfinite(loss2)))
    assert jnp.allclose(loss2, ref2, atol=5e-4, rtol=5e-4), (loss2, ref2)

    print("KERNEL_OK")
</pallas_src>

<mosaic_0001>
module attributes {stable_mosaic.version = 11 : i64} {
  func.func @lorentz_loss_kernel(%arg0: i32, %arg1: memref<8x33xf32, #tpu.memory_space<vmem>>, %arg2: memref<8x33xf32, #tpu.memory_space<vmem>>, %arg3: memref<8x33xf32, #tpu.memory_space<vmem>>, %arg4: memref<8x33xf32, #tpu.memory_space<vmem>>, %arg5: memref<1x128xi32, #tpu.memory_space<vmem>>, %arg6: memref<4x128xi32, #tpu.memory_space<vmem>>, %arg7: memref<1x128xf32, #tpu.memory_space<vmem>>) attributes {dimension_semantics = [#tpu.dimension_semantics<parallel>], iteration_bounds = array<i64: 1>, scalar_prefetch = 0 : i64, scratch_operands = 0 : i64, tpu.core_type = #tpu.core_type<tc>, window_params = [{pipeline_mode = #tpu.pipeline_mode<synchronous>, transform_indices = @transform_0, window_bounds = array<i64: 8, 33>}, {pipeline_mode = #tpu.pipeline_mode<synchronous>, transform_indices = @transform_1, window_bounds = array<i64: 8, 33>}, {pipeline_mode = #tpu.pipeline_mode<synchronous>, transform_indices = @transform_2, window_bounds = array<i64: 8, 33>}, {pipeline_mode = #tpu.pipeline_mode<synchronous>, transform_indices = @transform_3, window_bounds = array<i64: 8, 33>}, {transform_indices = @transform_4, window_bounds = array<i64: 1, 128>}, {transform_indices = @transform_5, window_bounds = array<i64: 4, 128>}, {transform_indices = @transform_6, window_bounds = array<i64: 1, 128>}]} {
    %c0 = arith.constant 0 : index
    %c0_0 = arith.constant 0 : index
    %0 = vector.load %arg1[%c0, %c0_0] : memref<8x33xf32, #tpu.memory_space<vmem>>, vector<8x33xf32>
    %c0_1 = arith.constant 0 : index
    %c0_2 = arith.constant 0 : index
    %1 = vector.load %arg2[%c0_1, %c0_2] : memref<8x33xf32, #tpu.memory_space<vmem>>, vector<8x33xf32>
    %c0_3 = arith.constant 0 : index
    %c0_4 = arith.constant 0 : index
    %2 = vector.load %arg3[%c0_3, %c0_4] : memref<8x33xf32, #tpu.memory_space<vmem>>, vector<8x33xf32>
    %c0_5 = arith.constant 0 : index
    %c0_6 = arith.constant 0 : index
    %3 = vector.load %arg4[%c0_5, %c0_6] : memref<8x33xf32, #tpu.memory_space<vmem>>, vector<8x33xf32>
    %4 = tpu.iota {dimensions = array<i32: 0>} : vector<33x128xi32>
    %c0_7 = arith.constant 0 : index
    %c0_8 = arith.constant 0 : index
    %5 = vector.load %arg5[%c0_7, %c0_8] : memref<1x128xi32, #tpu.memory_space<vmem>>, vector<1x128xi32>
    %6 = vector.broadcast %5 : vector<1x128xi32> to vector<33x128xi32>
    %7 = arith.cmpi eq, %4, %6 : vector<33x128xi32>
    %8 = arith.extui %7 : vector<33x128xi1> to vector<33x128xi32>
    %9 = arith.sitofp %8 : vector<33x128xi32> to vector<33x128xf32>
    %cst = arith.constant dense<0.000000e+00> : vector<8x128xf32>
    %10 = tpu.matmul %0, %9, %cst {dimension_numbers = #tpu.dot_dimension_numbers<[1], [0], [0], [1], [0, 0, 1, 1], [], []>} : vector<8x33xf32>, vector<33x128xf32>, vector<8x128xf32> -> vector<8x128xf32>
    %cst_9 = arith.constant dense<0.000000e+00> : vector<8x128xf32>
    %11 = tpu.matmul %1, %9, %cst_9 {dimension_numbers = #tpu.dot_dimension_numbers<[1], [0], [0], [1], [0, 0, 1, 1], [], []>} : vector<8x33xf32>, vector<33x128xf32>, vector<8x128xf32> -> vector<8x128xf32>
    %12 = arith.addf %10, %11 : vector<8x128xf32>
    %c0_10 = arith.constant 0 : index
    %c0_11 = arith.constant 0 : index
    %13 = vector.load %arg6[%c0_10, %c0_11] : memref<4x128xi32, #tpu.memory_space<vmem>>, vector<4x128xi32>
    %cst_12 = arith.constant 0.000000e+00 : f32
    %14 = vector.broadcast %cst_12 : f32 to vector<1x128xf32>
    %15 = vector.extract_strided_slice %13 {offsets = [0, 0], sizes = [1, 128], strides = [1, 1]} : vector<4x128xi32> to vector<1x128xi32>
    %16 = vector.broadcast %15 : vector<1x128xi32> to vector<33x128xi32>
    %17 = arith.cmpi eq, %4, %16 : vector<33x128xi32>
    %18 = arith.extui %17 : vector<33x128xi1> to vector<33x128xi32>
    %19 = arith.sitofp %18 : vector<33x128xi32> to vector<33x128xf32>
    %cst_13 = arith.constant dense<0.000000e+00> : vector<8x128xf32>
    %20 = tpu.matmul %2, %19, %cst_13 {dimension_numbers = #tpu.dot_dimension_numbers<[1], [0], [0], [1], [0, 0, 1, 1], [], []>} : vector<8x33xf32>, vector<33x128xf32>, vector<8x128xf32> -> vector<8x128xf32>
    %cst_14 = arith.constant dense<0.000000e+00> : vector<8x128xf32>
    %21 = tpu.matmul %3, %19, %cst_14 {dimension_numbers = #tpu.dot_dimension_numbers<[1], [0], [0], [1], [0, 0, 1, 1], [], []>} : vector<8x33xf32>, vector<33x128xf32>, vector<8x128xf32> -> vector<8x128xf32>
    %22 = arith.addf %20, %21 : vector<8x128xf32>
    %23 = arith.mulf %12, %22 : vector<8x128xf32>
    %cst_15 = arith.constant dense<0.000000e+00> : vector<128xf32>
    %24 = vector.multi_reduction <add>, %23, %cst_15 [0] : vector<8x128xf32> to vector<128xf32>
    %25 = vector.shape_cast %24 : vector<128xf32> to vector<1x128xf32>
    %cst_16 = arith.constant 1.000000e+00 : f32
    %26 = vector.broadcast %cst_16 : f32 to vector<1x128xf32>
    %27 = arith.cmpf ole, %25, %26 : vector<1x128xf32>
    %cst_17 = arith.constant 1.00000095 : f32
    %28 = vector.broadcast %cst_17 : f32 to vector<1x128xf32>
    %29 = arith.select %27, %28, %25 : vector<1x128xi1>, vector<1x128xf32>
    %30 = arith.mulf %29, %29 : vector<1x128xf32>
    %cst_18 = arith.constant 1.000000e+00 : f32
    %31 = vector.broadcast %cst_18 : f32 to vector<1x128xf32>
    %32 = arith.subf %30, %31 : vector<1x128xf32>
    %33 = math.sqrt %32 : vector<1x128xf32>
    %34 = arith.addf %29, %33 : vector<1x128xf32>
    %35 = math.log %34 : vector<1x128xf32>
    %cst_19 = arith.constant 0.000000e+00 : f32
    %36 = vector.broadcast %cst_19 : f32 to vector<1x128xf32>
    %37 = arith.subf %36, %35 : vector<1x128xf32>
    %38 = math.exp %37 : vector<1x128xf32>
    %39 = arith.addf %14, %38 : vector<1x128xf32>
    %40 = vector.extract_strided_slice %13 {offsets = [1, 0], sizes = [1, 128], strides = [1, 1]} : vector<4x128xi32> to vector<1x128xi32>
    %41 = vector.broadcast %40 : vector<1x128xi32> to vector<33x128xi32>
    %42 = arith.cmpi eq, %4, %41 : vector<33x128xi32>
    %43 = arith.extui %42 : vector<33x128xi1> to vector<33x128xi32>
    %44 = arith.sitofp %43 : vector<33x128xi32> to vector<33x128xf32>
    %cst_20 = arith.constant dense<0.000000e+00> : vector<8x128xf32>
    %45 = tpu.matmul %2, %44, %cst_20 {dimension_numbers = #tpu.dot_dimension_numbers<[1], [0], [0], [1], [0, 0, 1, 1], [], []>} : vector<8x33xf32>, vector<33x128xf32>, vector<8x128xf32> -> vector<8x128xf32>
    %cst_21 = arith.constant dense<0.000000e+00> : vector<8x128xf32>
    %46 = tpu.matmul %3, %44, %cst_21 {dimension_numbers = #tpu.dot_dimension_numbers<[1], [0], [0], [1], [0, 0, 1, 1], [], []>} : vector<8x33xf32>, vector<33x128xf32>, vector<8x128xf32> -> vector<8x128xf32>
    %47 = arith.addf %45, %46 : vector<8x128xf32>
    %48 = arith.mulf %12, %47 : vector<8x128xf32>
    %cst_22 = arith.constant dense<0.000000e+00> : vector<128xf32>
    %49 = vector.multi_reduction <add>, %48, %cst_22 [0] : vector<8x128xf32> to vector<128xf32>
    %50 = vector.shape_cast %49 : vector<128xf32> to vector<1x128xf32>
    %cst_23 = arith.constant 1.000000e+00 : f32
    %51 = vector.broadcast %cst_23 : f32 to vector<1x128xf32>
    %52 = arith.cmpf ole, %50, %51 : vector<1x128xf32>
    %cst_24 = arith.constant 1.00000095 : f32
    %53 = vector.broadcast %cst_24 : f32 to vector<1x128xf32>
    %54 = arith.select %52, %53, %50 : vector<1x128xi1>, vector<1x128xf32>
    %55 = arith.mulf %54, %54 : vector<1x128xf32>
    %cst_25 = arith.constant 1.000000e+00 : f32
    %56 = vector.broadcast %cst_25 : f32 to vector<1x128xf32>
    %57 = arith.subf %55, %56 : vector<1x128xf32>
    %58 = math.sqrt %57 : vector<1x128xf32>
    %59 = arith.addf %54, %58 : vector<1x128xf32>
    %60 = math.log %59 : vector<1x128xf32>
    %cst_26 = arith.constant 0.000000e+00 : f32
    %61 = vector.broadcast %cst_26 : f32 to vector<1x128xf32>
    %62 = arith.subf %61, %60 : vector<1x128xf32>
    %63 = math.exp %62 : vector<1x128xf32>
    %64 = arith.addf %39, %63 : vector<1x128xf32>
    %65 = vector.extract_strided_slice %13 {offsets = [2, 0], sizes = [1, 128], strides = [1, 1]} : vector<4x128xi32> to vector<1x128xi32>
    %66 = vector.broadcast %65 : vector<1x128xi32> to vector<33x128xi32>
    %67 = arith.cmpi eq, %4, %66 : vector<33x128xi32>
    %68 = arith.extui %67 : vector<33x128xi1> to vector<33x128xi32>
    %69 = arith.sitofp %68 : vector<33x128xi32> to vector<33x128xf32>
    %cst_27 = arith.constant dense<0.000000e+00> : vector<8x128xf32>
    %70 = tpu.matmul %2, %69, %cst_27 {dimension_numbers = #tpu.dot_dimension_numbers<[1], [0], [0], [1], [0, 0, 1, 1], [], []>} : vector<8x33xf32>, vector<33x128xf32>, vector<8x128xf32> -> vector<8x128xf32>
    %cst_28 = arith.constant dense<0.000000e+00> : vector<8x128xf32>
    %71 = tpu.matmul %3, %69, %cst_28 {dimension_numbers = #tpu.dot_dimension_numbers<[1], [0], [0], [1], [0, 0, 1, 1], [], []>} : vector<8x33xf32>, vector<33x128xf32>, vector<8x128xf32> -> vector<8x128xf32>
    %72 = arith.addf %70, %71 : vector<8x128xf32>
    %73 = arith.mulf %12, %72 : vector<8x128xf32>
    %cst_29 = arith.constant dense<0.000000e+00> : vector<128xf32>
    %74 = vector.multi_reduction <add>, %73, %cst_29 [0] : vector<8x128xf32> to vector<128xf32>
    %75 = vector.shape_cast %74 : vector<128xf32> to vector<1x128xf32>
    %cst_30 = arith.constant 1.000000e+00 : f32
    %76 = vector.broadcast %cst_30 : f32 to vector<1x128xf32>
    %77 = arith.cmpf ole, %75, %76 : vector<1x128xf32>
    %cst_31 = arith.constant 1.00000095 : f32
    %78 = vector.broadcast %cst_31 : f32 to vector<1x128xf32>
    %79 = arith.select %77, %78, %75 : vector<1x128xi1>, vector<1x128xf32>
    %80 = arith.mulf %79, %79 : vector<1x128xf32>
    %cst_32 = arith.constant 1.000000e+00 : f32
    %81 = vector.broadcast %cst_32 : f32 to vector<1x128xf32>
    %82 = arith.subf %80, %81 : vector<1x128xf32>
    %83 = math.sqrt %82 : vector<1x128xf32>
    %84 = arith.addf %79, %83 : vector<1x128xf32>
    %85 = math.log %84 : vector<1x128xf32>
    %cst_33 = arith.constant 0.000000e+00 : f32
    %86 = vector.broadcast %cst_33 : f32 to vector<1x128xf32>
    %87 = arith.subf %86, %85 : vector<1x128xf32>
    %88 = math.exp %87 : vector<1x128xf32>
    %89 = arith.addf %64, %88 : vector<1x128xf32>
    %90 = vector.extract_strided_slice %13 {offsets = [3, 0], sizes = [1, 128], strides = [1, 1]} : vector<4x128xi32> to vector<1x128xi32>
    %91 = vector.broadcast %90 : vector<1x128xi32> to vector<33x128xi32>
    %92 = arith.cmpi eq, %4, %91 : vector<33x128xi32>
    %93 = arith.extui %92 : vector<33x128xi1> to vector<33x128xi32>
    %94 = arith.sitofp %93 : vector<33x128xi32> to vector<33x128xf32>
    %cst_34 = arith.constant dense<0.000000e+00> : vector<8x128xf32>
    %95 = tpu.matmul %2, %94, %cst_34 {dimension_numbers = #tpu.dot_dimension_numbers<[1], [0], [0], [1], [0, 0, 1, 1], [], []>} : vector<8x33xf32>, vector<33x128xf32>, vector<8x128xf32> -> vector<8x128xf32>
    %cst_35 = arith.constant dense<0.000000e+00> : vector<8x128xf32>
    %96 = tpu.matmul %3, %94, %cst_35 {dimension_numbers = #tpu.dot_dimension_numbers<[1], [0], [0], [1], [0, 0, 1, 1], [], []>} : vector<8x33xf32>, vector<33x128xf32>, vector<8x128xf32> -> vector<8x128xf32>
    %97 = arith.addf %95, %96 : vector<8x128xf32>
    %98 = arith.mulf %12, %97 : vector<8x128xf32>
    %cst_36 = arith.constant dense<0.000000e+00> : vector<128xf32>
    %99 = vector.multi_reduction <add>, %98, %cst_36 [0] : vector<8x128xf32> to vector<128xf32>
    %100 = vector.shape_cast %99 : vector<128xf32> to vector<1x128xf32>
    %cst_37 = arith.constant 1.000000e+00 : f32
    %101 = vector.broadcast %cst_37 : f32 to vector<1x128xf32>
    %102 = arith.cmpf ole, %100, %101 : vector<1x128xf32>
    %cst_38 = arith.constant 1.00000095 : f32
    %103 = vector.broadcast %cst_38 : f32 to vector<1x128xf32>
    %104 = arith.select %102, %103, %100 : vector<1x128xi1>, vector<1x128xf32>
    %105 = arith.mulf %104, %104 : vector<1x128xf32>
    %cst_39 = arith.constant 1.000000e+00 : f32
    %106 = vector.broadcast %cst_39 : f32 to vector<1x128xf32>
    %107 = arith.subf %105, %106 : vector<1x128xf32>
    %108 = math.sqrt %107 : vector<1x128xf32>
    %109 = arith.addf %104, %108 : vector<1x128xf32>
    %110 = math.log %109 : vector<1x128xf32>
    %cst_40 = arith.constant 0.000000e+00 : f32
    %111 = vector.broadcast %cst_40 : f32 to vector<1x128xf32>
    %112 = arith.subf %111, %110 : vector<1x128xf32>
    %113 = math.exp %112 : vector<1x128xf32>
    %114 = arith.addf %89, %113 : vector<1x128xf32>
    %cst_41 = arith.constant 9.99999997E-7 : f32
    %115 = vector.broadcast %cst_41 : f32 to vector<1x128xf32>
    %116 = arith.addf %114, %115 : vector<1x128xf32>
    %117 = math.log %116 : vector<1x128xf32>
    %118 = arith.subf %117, %37 : vector<1x128xf32>
    %c0_42 = arith.constant 0 : index
    %c0_43 = arith.constant 0 : index
    %119 = vector.load %arg7[%c0_42, %c0_43] : memref<1x128xf32, #tpu.memory_space<vmem>>, vector<1x128xf32>
    tpu.vector_store %arg7[%c0_42, %c0_43], %118 {strides = array<i32>} : memref<1x128xf32, #tpu.memory_space<vmem>>, vector<1x128xf32>,
    return
  }
  func.func @transform_0(%arg0: i32) -> (i32, i32) {
    %c0_i32 = arith.constant 0 : i32
    %c0_i32_0 = arith.constant 0 : i32
    %c0_i32_1 = arith.constant 0 : i32
    return %c0_i32, %c0_i32_0 : i32, i32
  }
  func.func @transform_1(%arg0: i32) -> (i32, i32) {
    %c0_i32 = arith.constant 0 : i32
    %c0_i32_0 = arith.constant 0 : i32
    %c0_i32_1 = arith.constant 0 : i32
    return %c0_i32, %c0_i32_0 : i32, i32
  }
  func.func @transform_2(%arg0: i32) -> (i32, i32) {
    %c0_i32 = arith.constant 0 : i32
    %c0_i32_0 = arith.constant 0 : i32
    %c0_i32_1 = arith.constant 0 : i32
    return %c0_i32, %c0_i32_0 : i32, i32
  }
  func.func @transform_3(%arg0: i32) -> (i32, i32) {
    %c0_i32 = arith.constant 0 : i32
    %c0_i32_0 = arith.constant 0 : i32
    %c0_i32_1 = arith.constant 0 : i32
    return %c0_i32, %c0_i32_0 : i32, i32
  }
  func.func @transform_4(%arg0: i32) -> (i32, i32) {
    %c0_i32 = arith.constant 0 : i32
    %c0_i32_0 = arith.constant 0 : i32
    return %c0_i32, %arg0 : i32, i32
  }
  func.func @transform_5(%arg0: i32) -> (i32, i32) {
    %c0_i32 = arith.constant 0 : i32
    %c0_i32_0 = arith.constant 0 : i32
    return %c0_i32, %arg0 : i32, i32
  }
  func.func @transform_6(%arg0: i32) -> (i32, i32) {
    %c0_i32 = arith.constant 0 : i32
    %c0_i32_0 = arith.constant 0 : i32
    return %c0_i32, %arg0 : i32, i32
  }
}

</mosaic_0001>

<llo_original>
// kernel: tpu_custom_call.1
$region0: #{tpu_custom_call.1}
  #allocation0 [shape = 'u32[]', space=smem, size = 0x4, offset = 0x4, fixed_abs, tag = 'smem constant byte address 0x4 - core index']
  #allocation1 [shape = 'u32[72,128]{1,0:T(1,128)}', space=vmem, size = 0x9000, scoped, tag = 'internal scratch']
  %s0 = inlined_call_operand.hbm [shape: f32[8,33], index: 0, kind: input, shape index: {}]
  %s1 = inlined_call_operand.hbm [shape: f32[8,33], index: 1, kind: input, shape index: {}]
  %s2 = inlined_call_operand.hbm [shape: f32[8,33], index: 2, kind: input, shape index: {}]
  %s3 = inlined_call_operand.hbm [shape: f32[8,33], index: 3, kind: input, shape index: {}]
  %s4 = inlined_call_operand.hbm [shape: s32[1,128], index: 4, kind: input, shape index: {}]
  %s5 = inlined_call_operand.vmem [shape: s32[4,128], index: 5, kind: input, shape index: {}]
  %s6 = inlined_call_operand.hbm [shape: f32[1,128], index: 6, kind: output, shape index: {}]
  %s7 = sld [smem:[#allocation0]]
  $region54: #{tpu_custom_call.1} parent=0
    _
  %s9 = ssub.s32 1, %s7
  %s10 = scalar_select 0, %s9, %s7
  $region1: #{tpu_custom_call.1} parent=0
    #allocation2 [shape = 'u8[4096]{0}', space=vmem, size = 0x1000, scoped, tag = 'input window, operand 0, single buffered']
    #allocation3 [shape = 's32[1]{0}', space=sflag, size = 0x4, scoped, tag = 'scoped memory for tpu_custom_call.1']
    #allocation4 [shape = 's32[1]{0}', space=sflag, size = 0x4, scoped, tag = 'scoped memory for tpu_custom_call.1']
    #allocation5 [shape = 'u8[4096]{0}', space=vmem, size = 0x1000, scoped, tag = 'input window, operand 1, single buffered']
    #allocation6 [shape = 's32[1]{0}', space=sflag, size = 0x4, scoped, tag = 'scoped memory for tpu_custom_call.1']
    #allocation7 [shape = 'u8[4096]{0}', space=vmem, size = 0x1000, scoped, tag = 'input window, operand 2, single buffered']
    #allocation8 [shape = 'u8[4096]{0}', space=vmem, size = 0x1000, scoped, tag = 'input window, operand 3, single buffered']
    #allocation9 [shape = 's32[1]{0}', space=sflag, size = 0x4, scoped, tag = 'scoped memory for tpu_custom_call.1']
    #allocation10 [shape = 'u8[512]{0}', space=vmem, size = 0x400, scoped, tag = 'input window, operand 4, single buffered']
    #allocation11 [shape = 'u8[512]{0}', space=vmem, size = 0x400, scoped, tag = 'output window, operand 0, single buffered']
    %11 = vsyncpa [#allocation3], 0
    %12 = vsyncpa [#allocation6], 0
    %13 = vsyncpa [#allocation9], 0
    %14 = vsyncpa [#allocation4], 0
    // Predicated region
    $region2: #{tpu_custom_call.1} parent=1 // pred_check
      _
    $region3: #{tpu_custom_call.1} parent=1 // pred_check_branch
      %16 = sbr.rel (0) target = $region5
    $region4: #{tpu_custom_call.1} parent=1 // pred_region
      %18 = vsyncadd [#allocation3], 0
      %s20 = sshll.u32 %s0, 4
      %s21 = int_to_ptr.hbm [resolvable:$true] %s20
      %s22 = sshll.u32 [#allocation2], 4
      %s23 = int_to_ptr.vmem [resolvable:$true] %s22
      %25 = dma.hbm_to_vmem [thread:$0]  %s21, 128, %s23, [#allocation3]
    $region5: #{tpu_custom_call.1} parent=1 // pred_fallthru
      _
    // Predicated region
    $region6: #{tpu_custom_call.1} parent=1 // pred_check
      _
    $region7: #{tpu_custom_call.1} parent=1 // pred_check_branch
      %27 = sbr.rel (0) target = $region9
    $region8: #{tpu_custom_call.1} parent=1 // pred_region
      %29 = vsyncadd [#allocation6], 0
      %s31 = sshll.u32 %s1, 4
      %s32 = int_to_ptr.hbm [resolvable:$true] %s31
      %s33 = sshll.u32 [#allocation5], 4
      %s34 = int_to_ptr.vmem [resolvable:$true] %s33
      %36 = dma.hbm_to_vmem [thread:$0]  %s32, 128, %s34, [#allocation6]
    $region9: #{tpu_custom_call.1} parent=1 // pred_fallthru
      _
    // Predicated region
    $region10: #{tpu_custom_call.1} parent=1 // pred_check
      _
    $region11: #{tpu_custom_call.1} parent=1 // pred_check_branch
      %38 = sbr.rel (0) target = $region13
    $region12: #{tpu_custom_call.1} parent=1 // pred_region
      %40 = vsyncadd [#allocation6], 0
      %s42 = sshll.u32 %s2, 4
      %s43 = int_to_ptr.hbm [resolvable:$true] %s42
      %s44 = sshll.u32 [#allocation7], 4
      %s45 = int_to_ptr.vmem [resolvable:$true] %s44
      %47 = dma.hbm_to_vmem [thread:$0]  %s43, 128, %s45, [#allocation6]
    $region13: #{tpu_custom_call.1} parent=1 // pred_fallthru
      _
    // Predicated region
    $region14: #{tpu_custom_call.1} parent=1 // pred_check
      _
    $region15: #{tpu_custom_call.1} parent=1 // pred_check_branch
      %49 = sbr.rel (0) target = $region17
    $region16: #{tpu_custom_call.1} parent=1 // pred_region
      %51 = vsyncadd [#allocation9], 0
      %s53 = sshll.u32 %s3, 4
      %s54 = int_to_ptr.hbm [resolvable:$true] %s53
      %s55 = sshll.u32 [#allocation8], 4
      %s56 = int_to_ptr.vmem [resolvable:$true] %s55
      %58 = dma.hbm_to_vmem [thread:$0]  %s54, 128, %s56, [#allocation9]
    $region17: #{tpu_custom_call.1} parent=1 // pred_fallthru
      _
    // Predicated region
    $region18: #{tpu_custom_call.1} parent=1 // pred_check
      _
    $region19: #{tpu_custom_call.1} parent=1 // pred_check_branch
      %60 = sbr.rel (0) target = $region21
    $region20: #{tpu_custom_call.1} parent=1 // pred_region
      %62 = vsyncadd [#allocation9], 0
      %s64 = sshll.u32 %s4, 4
      %s65 = int_to_ptr.hbm [resolvable:$true] %s64
      %s66 = sshll.u32 [#allocation10], 4
      %s67 = int_to_ptr.vmem [resolvable:$true] %s66
      %69 = dma.hbm_to_vmem [thread:$0]  %s65, 16, %s67, [#allocation9]
    $region21: #{tpu_custom_call.1} parent=1 // pred_fallthru
      _
    // Predicated region
    $region22: #{tpu_custom_call.1} parent=1 // pred_check
      _
    $region23: #{tpu_custom_call.1} parent=1 // pred_check_branch
      %71 = sbr.rel (0) target = $region25
    $region24: #{tpu_custom_call.1} parent=1 // pred_region
      _
    $region25: #{tpu_custom_call.1} parent=1 // pred_fallthru
      _
    // Predicated region
    $region26: #{tpu_custom_call.1} parent=1 // pred_check
      _
    $region27: #{tpu_custom_call.1} parent=1 // pred_check_branch
      %73 = sbr.rel (0) target = $region29
    $region28: #{tpu_custom_call.1} parent=1 // pred_region
      %75 = dma.done [#allocation3], 128
    $region29: #{tpu_custom_call.1} parent=1 // pred_fallthru
      _
    // Predicated region
    $region30: #{tpu_custom_call.1} parent=1 // pred_check
      _
    $region31: #{tpu_custom_call.1} parent=1 // pred_check_branch
      %77 = sbr.rel (0) target = $region33
    $region32: #{tpu_custom_call.1} parent=1 // pred_region
      %79 = dma.done [#allocation6], 128
    $region33: #{tpu_custom_call.1} parent=1 // pred_fallthru
      _
    // Predicated region
    $region34: #{tpu_custom_call.1} parent=1 // pred_check
      _
    $region35: #{tpu_custom_call.1} parent=1 // pred_check_branch
      %81 = sbr.rel (0) target = $region37
    $region36: #{tpu_custom_call.1} parent=1 // pred_region
      %83 = dma.done [#allocation6], 128
    $region37: #{tpu_custom_call.1} parent=1 // pred_fallthru
      _
    // Predicated region
    $region38: #{tpu_custom_call.1} parent=1 // pred_check
      _
    $region39: #{tpu_custom_call.1} parent=1 // pred_check_branch
      %85 = sbr.rel (0) target = $region41
    $region40: #{tpu_custom_call.1} parent=1 // pred_region
      %87 = dma.done [#allocation9], 128
    $region41: #{tpu_custom_call.1} parent=1 // pred_fallthru
      _
    // Predicated region
    $region42: #{tpu_custom_call.1} parent=1 // pred_check
      _
    $region43: #{tpu_custom_call.1} parent=1 // pred_check_branch
      %89 = sbr.rel (0) target = $region45
    $region44: #{tpu_custom_call.1} parent=1 // pred_region
      %91 = dma.done [#allocation9], 16
    $region45: #{tpu_custom_call.1} parent=1 // pred_fallthru
      _
    %v92 = vld [vmem:[#allocation2] sm:$0xff]
    %v93 = vld [vmem:[#allocation5] sm:$0xff]
    %v94 = vld [vmem:[#allocation7] sm:$0xff]
    %v95 = vld [vmem:[#allocation8] sm:$0xff]
    %v96 = vlaneseq
    %v97 = vshrl.u32 %v96, 7
    %v98 = vadd.s32 %v97, 8
    %v99 = vadd.s32 %v97, 16
    %v100 = vadd.s32 %v97, 24
    %v101 = vadd.s32 %v97, 32
    %v102 = vld [vmem:[#allocation10] sm:$0x1]
    %v103 = vperm.slane %v102, 0
    %vm104 = vcmp.eq.s32.totalorder %v97, %v103
    %vm105 = vcmp.eq.s32.totalorder %v98, %v103
    %vm106 = vcmp.eq.s32.totalorder %v99, %v103
    %vm107 = vcmp.eq.s32.totalorder %v100, %v103
    %vm108 = vcmp.eq.s32.totalorder %v101, %v103
    %v109 = vsel %vm104, 1, 0
    %v110 = vsel %vm105, 1, 0
    %v111 = vsel %vm106, 1, 0
    %v112 = vsel %vm107, 1, 0
    %v113 = vsel %vm108, 1, 0
    %v114 = vcvt.s32.f32 %v109
    %v115 = vcvt.s32.f32 %v110
    %v116 = vcvt.s32.f32 %v111
    %v117 = vcvt.s32.f32 %v112
    %v118 = vcvt.s32.f32 %v113
    %vm119 = vcmask 269312
    %v121 = vsel %vm119, %v93, 0
    %vm123 = vcmask 1040384
    %v125 = vsel %vm123, %v118, 0
    %127 = vmatpush.msra.mxu0 0.0
    %128 = vmatpush.msra.mxu0 0.0
    %129 = vmatpush.msra.mxu0 0.0
    %130 = vmatpush.msra.mxu0 0.0
    %131 = vmatpush.msra.mxu0 0.0
    %132 = vmatpush.msra.mxu0 0.0
    %133 = vmatpush.msra.mxu0 0.0
    %134 = vmatpush.msra.mxu0 0.0
    %135 = vmatpush.msra.mxu0 0.0
    %136 = vmatpush.msra.mxu0 0.0
    %137 = vmatpush.msra.mxu0 0.0
    %138 = vmatpush.msra.mxu0 %v125
    %139 = vmatpush.msra.mxu0 %v117
    %140 = vmatpush.msra.mxu0 %v116
    %141 = vmatpush.msra.mxu0 %v115
    %142 = vmatpush.msra.mxu0 %v114
    %143 = vmatmul.f32.gmra.mxu0 %v121
    %v144 = vpop.f32.mrf.mxu0
    %v145 = vadd.f32 0.0, %v144
    %146 = vdwg.mxu0
    %v148 = vsel %vm119, %v92, 0
    %150 = vmatpush.msra.mxu0 0.0
    %151 = vmatpush.msra.mxu0 0.0
    %152 = vmatpush.msra.mxu0 0.0
    %153 = vmatpush.msra.mxu0 0.0
    %154 = vmatpush.msra.mxu0 0.0
    %155 = vmatpush.msra.mxu0 0.0
    %156 = vmatpush.msra.mxu0 0.0
    %157 = vmatpush.msra.mxu0 0.0
    %158 = vmatpush.msra.mxu0 0.0
    %159 = vmatpush.msra.mxu0 0.0
    %160 = vmatpush.msra.mxu0 0.0
    %161 = vmatpush.msra.mxu0 %v125
    %162 = vmatpush.msra.mxu0 %v117
    %163 = vmatpush.msra.mxu0 %v116
    %164 = vmatpush.msra.mxu0 %v115
    %165 = vmatpush.msra.mxu0 %v114
    %166 = vmatmul.f32.gmra.mxu0 %v148
    %v167 = vpop.f32.mrf.mxu0
    %v168 = vadd.f32 %v145, %v167
    %169 = vdwg.mxu0
    %v170 = vld [vmem:[%s5] sm:$0xf]
    %v171 = vperm.slane %v170, 0
    %vm172 = vcmp.eq.s32.totalorder %v97, %v171
    %vm173 = vcmp.eq.s32.totalorder %v98, %v171
    %vm174 = vcmp.eq.s32.totalorder %v99, %v171
    %vm175 = vcmp.eq.s32.totalorder %v100, %v171
    %vm176 = vcmp.eq.s32.totalorder %v101, %v171
    %v177 = vsel %vm172, 1, 0
    %v178 = vsel %vm173, 1, 0
    %v179 = vsel %vm174, 1, 0
    %v180 = vsel %vm175, 1, 0
    %v181 = vsel %vm176, 1, 0
    %v182 = vcvt.s32.f32 %v177
    %v183 = vcvt.s32.f32 %v178
    %v184 = vcvt.s32.f32 %v179
    %v185 = vcvt.s32.f32 %v180
    %v186 = vcvt.s32.f32 %v181
    %v188 = vsel %vm119, %v95, 0
    %v191 = vsel %vm123, %v186, 0
    %193 = vmatpush.msra.mxu0 0.0
    %194 = vmatpush.msra.mxu0 0.0
    %195 = vmatpush.msra.mxu0 0.0
    %196 = vmatpush.msra.mxu0 0.0
    %197 = vmatpush.msra.mxu0 0.0
    %198 = vmatpush.msra.mxu0 0.0
    %199 = vmatpush.msra.mxu0 0.0
    %200 = vmatpush.msra.mxu0 0.0
    %201 = vmatpush.msra.mxu0 0.0
    %202 = vmatpush.msra.mxu0 0.0
    %203 = vmatpush.msra.mxu0 0.0
    %204 = vmatpush.msra.mxu0 %v191
    %205 = vmatpush.msra.mxu0 %v185
    %206 = vmatpush.msra.mxu0 %v184
    %207 = vmatpush.msra.mxu0 %v183
    %208 = vmatpush.msra.mxu0 %v182
    %209 = vmatmul.f32.gmra.mxu0 %v188
    %v210 = vpop.f32.mrf.mxu0
    %v211 = vadd.f32 0.0, %v210
    %212 = vdwg.mxu0
    %v214 = vsel %vm119, %v94, 0
    %216 = vmatpush.msra.mxu0 0.0
    %217 = vmatpush.msra.mxu0 0.0
    %218 = vmatpush.msra.mxu0 0.0
    %219 = vmatpush.msra.mxu0 0.0
    %220 = vmatpush.msra.mxu0 0.0
    %221 = vmatpush.msra.mxu0 0.0
    %222 = vmatpush.msra.mxu0 0.0
    %223 = vmatpush.msra.mxu0 0.0
    %224 = vmatpush.msra.mxu0 0.0
    %225 = vmatpush.msra.mxu0 0.0
    %226 = vmatpush.msra.mxu0 0.0
    %227 = vmatpush.msra.mxu0 %v191
    %228 = vmatpush.msra.mxu0 %v185
    %229 = vmatpush.msra.mxu0 %v184
    %230 = vmatpush.msra.mxu0 %v183
    %231 = vmatpush.msra.mxu0 %v182
    %232 = vmatmul.f32.gmra.mxu0 %v214
    %v233 = vpop.f32.mrf.mxu0
    %v234 = vadd.f32 %v211, %v233
    %235 = vdwg.mxu0
    %v236 = vmul.f32 %v168, %v234
    %v237 = vrot.slane %v236, 4
    %v238 = vadd.f32 %v236, %v237
    %v239 = vrot.slane %v238, 2
    %v240 = vadd.f32 %v238, %v239
    %v241 = vrot.slane %v240, 1
    %v242 = vadd.f32 %v240, %v241
    %vm243 = vcmp.le.f32.partialorder %v242, 1.0
    %v244 = vsel %vm243, 1.000001, %v242
    %v245 = vmul.f32 %v244, %v244
    %v246 = vsub.f32 %v245, 1.0
    %v247 = vrsqrt.pop %v246
    %v248 = vmul.f32 %v247, %v246
    %v249 = vmul.f32 %v248, %v247
    %v250 = vmul.f32 0.5, %v249
    %v251 = vsub.f32 1.5, %v250
    %v252 = vmul.f32 %v247, %v251
    %v253 = vmul.f32 %v246, %v252
    %vm254 = vcmp.eq.f32.partialorder %v246, inf
    %v255 = vsel %vm254, %v246, %v253
    %vm256 = vcmp.eq.f32.partialorder %v246, 0.0
    %v257 = vand.u32 %v246, 2147483648
    %v258 = vsel %vm256, %v257, %v255
    %v259 = vadd.f32 %v244, %v258
    %v260 = vlog2.pop %v259
    %v261 = vmul.f32 %v260, 0.6931472
    %v262 = vsub.f32 0.0, %v261
    %v263 = vmul.f32 %v262, 1.442695
    %v264 = vpow.pop %v263
    %v265 = vadd.f32 %v264, 0.0
    %v266 = vperm.slane %v170, 1
    %vm267 = vcmp.eq.s32.totalorder %v97, %v266
    %vm268 = vcmp.eq.s32.totalorder %v98, %v266
    %vm269 = vcmp.eq.s32.totalorder %v99, %v266
    %vm270 = vcmp.eq.s32.totalorder %v100, %v266
    %vm271 = vcmp.eq.s32.totalorder %v101, %v266
    %v272 = vsel %vm267, 1, 0
    %v273 = vsel %vm268, 1, 0
    %v274 = vsel %vm269, 1, 0
    %v275 = vsel %vm270, 1, 0
    %v276 = vsel %vm271, 1, 0
    %v277 = vcvt.s32.f32 %v272
    %v278 = vcvt.s32.f32 %v273
    %v279 = vcvt.s32.f32 %v274
    %v280 = vcvt.s32.f32 %v275
    %v281 = vcvt.s32.f32 %v276
    %v283 = vsel %vm123, %v281, 0
    %285 = vmatpush.msra.mxu0 0.0
    %286 = vmatpush.msra.mxu0 0.0
    %287 = vmatpush.msra.mxu0 0.0
    %288 = vmatpush.msra.mxu0 0.0
    %289 = vmatpush.msra.mxu0 0.0
    %290 = vmatpush.msra.mxu0 0.0
    %291 = vmatpush.msra.mxu0 0.0
    %292 = vmatpush.msra.mxu0 0.0
    %293 = vmatpush.msra.mxu0 0.0
    %294 = vmatpush.msra.mxu0 0.0
    %295 = vmatpush.msra.mxu0 0.0
    %296 = vmatpush.msra.mxu0 %v283
    %297 = vmatpush.msra.mxu0 %v280
    %298 = vmatpush.msra.mxu0 %v279
    %299 = vmatpush.msra.mxu0 %v278
    %300 = vmatpush.msra.mxu0 %v277
    %301 = vmatmul.f32.gmra.mxu0 %v188
    %v302 = vpop.f32.mrf.mxu0
    %v303 = vadd.f32 0.0, %v302
    %304 = vdwg.mxu0
    %305 = vmatpush.msra.mxu0 0.0
    %306 = vmatpush.msra.mxu0 0.0
    %307 = vmatpush.msra.mxu0 0.0
    %308 = vmatpush.msra.mxu0 0.0
    %309 = vmatpush.msra.mxu0 0.0
    %310 = vmatpush.msra.mxu0 0.0
    %311 = vmatpush.msra.mxu0 0.0
    %312 = vmatpush.msra.mxu0 0.0
    %313 = vmatpush.msra.mxu0 0.0
    %314 = vmatpush.msra.mxu0 0.0
    %315 = vmatpush.msra.mxu0 0.0
    %316 = vmatpush.msra.mxu0 %v283
    %317 = vmatpush.msra.mxu0 %v280
    %318 = vmatpush.msra.mxu0 %v279
    %319 = vmatpush.msra.mxu0 %v278
    %320 = vmatpush.msra.mxu0 %v277
    %321 = vmatmul.f32.gmra.mxu0 %v214
    %v322 = vpop.f32.mrf.mxu0
    %v323 = vadd.f32 %v303, %v322
    %324 = vdwg.mxu0
    %v325 = vmul.f32 %v168, %v323
    %v326 = vrot.slane %v325, 4
    %v327 = vadd.f32 %v325, %v326
    %v328 = vrot.slane %v327, 2
    %v329 = vadd.f32 %v327, %v328
    %v330 = vrot.slane %v329, 1
    %v331 = vadd.f32 %v329, %v330
    %vm332 = vcmp.le.f32.partialorder %v331, 1.0
    %v333 = vsel %vm332, 1.000001, %v331
    %v334 = vmul.f32 %v333, %v333
    %v335 = vsub.f32 %v334, 1.0
    %v336 = vrsqrt.pop %v335
    %v337 = vmul.f32 %v336, %v335
    %v338 = vmul.f32 %v337, %v336
    %v339 = vmul.f32 0.5, %v338
    %v340 = vsub.f32 1.5, %v339
    %v341 = vmul.f32 %v336, %v340
    %v342 = vmul.f32 %v335, %v341
    %vm343 = vcmp.eq.f32.partialorder %v335, inf
    %v344 = vsel %vm343, %v335, %v342
    %vm345 = vcmp.eq.f32.partialorder %v335, 0.0
    %v346 = vand.u32 %v335, 2147483648
    %v347 = vsel %vm345, %v346, %v344
    %v348 = vadd.f32 %v333, %v347
    %v349 = vlog2.pop %v348
    %v350 = vmul.f32 %v349, 0.6931472
    %v351 = vsub.f32 0.0, %v350
    %v352 = vmul.f32 %v351, 1.442695
    %v353 = vpow.pop %v352
    %v354 = vadd.f32 %v265, %v353
    %v355 = vperm.slane %v170, 2
    %vm356 = vcmp.eq.s32.totalorder %v97, %v355
    %vm357 = vcmp.eq.s32.totalorder %v98, %v355
    %vm358 = vcmp.eq.s32.totalorder %v99, %v355
    %vm359 = vcmp.eq.s32.totalorder %v100, %v355
    %vm360 = vcmp.eq.s32.totalorder %v101, %v355
    %v361 = vsel %vm356, 1, 0
    %v362 = vsel %vm357, 1, 0
    %v363 = vsel %vm358, 1, 0
    %v364 = vsel %vm359, 1, 0
    %v365 = vsel %vm360, 1, 0
    %v366 = vcvt.s32.f32 %v361
    %v367 = vcvt.s32.f32 %v362
    %v368 = vcvt.s32.f32 %v363
    %v369 = vcvt.s32.f32 %v364
    %v370 = vcvt.s32.f32 %v365
    %v372 = vsel %vm123, %v370, 0
    %374 = vmatpush.msra.mxu0 0.0
    %375 = vmatpush.msra.mxu0 0.0
    %376 = vmatpush.msra.mxu0 0.0
    %377 = vmatpush.msra.mxu0 0.0
    %378 = vmatpush.msra.mxu0 0.0
    %379 = vmatpush.msra.mxu0 0.0
    %380 = vmatpush.msra.mxu0 0.0
    %381 = vmatpush.msra.mxu0 0.0
    %382 = vmatpush.msra.mxu0 0.0
    %383 = vmatpush.msra.mxu0 0.0
    %384 = vmatpush.msra.mxu0 0.0
    %385 = vmatpush.msra.mxu0 %v372
    %386 = vmatpush.msra.mxu0 %v369
    %387 = vmatpush.msra.mxu0 %v368
    %388 = vmatpush.msra.mxu0 %v367
    %389 = vmatpush.msra.mxu0 %v366
    %390 = vmatmul.f32.gmra.mxu0 %v188
    %v391 = vpop.f32.mrf.mxu0
    %v392 = vadd.f32 0.0, %v391
    %393 = vdwg.mxu0
    %394 = vmatpush.msra.mxu0 0.0
    %395 = vmatpush.msra.mxu0 0.0
    %396 = vmatpush.msra.mxu0 0.0
    %397 = vmatpush.msra.mxu0 0.0
    %398 = vmatpush.msra.mxu0 0.0
    %399 = vmatpush.msra.mxu0 0.0
    %400 = vmatpush.msra.mxu0 0.0
    %401 = vmatpush.msra.mxu0 0.0
    %402 = vmatpush.msra.mxu0 0.0
    %403 = vmatpush.msra.mxu0 0.0
    %404 = vmatpush.msra.mxu0 0.0
    %405 = vmatpush.msra.mxu0 %v372
    %406 = vmatpush.msra.mxu0 %v369
    %407 = vmatpush.msra.mxu0 %v368
    %408 = vmatpush.msra.mxu0 %v367
    %409 = vmatpush.msra.mxu0 %v366
    %410 = vmatmul.f32.gmra.mxu0 %v214
    %v411 = vpop.f32.mrf.mxu0
    %v412 = vadd.f32 %v392, %v411
    %413 = vdwg.mxu0
    %v414 = vmul.f32 %v168, %v412
    %v415 = vrot.slane %v414, 4
    %v416 = vadd.f32 %v414, %v415
    %v417 = vrot.slane %v416, 2
    %v418 = vadd.f32 %v416, %v417
    %v419 = vrot.slane %v418, 1
    %v420 = vadd.f32 %v418, %v419
    %vm421 = vcmp.le.f32.partialorder %v420, 1.0
    %v422 = vsel %vm421, 1.000001, %v420
    %v423 = vmul.f32 %v422, %v422
    %v424 = vsub.f32 %v423, 1.0
    %v425 = vrsqrt.pop %v424
    %v426 = vmul.f32 %v425, %v424
    %v427 = vmul.f32 %v426, %v425
    %v428 = vmul.f32 0.5, %v427
    %v429 = vsub.f32 1.5, %v428
    %v430 = vmul.f32 %v425, %v429
    %v431 = vmul.f32 %v424, %v430
    %vm432 = vcmp.eq.f32.partialorder %v424, inf
    %v433 = vsel %vm432, %v424, %v431
    %vm434 = vcmp.eq.f32.partialorder %v424, 0.0
    %v435 = vand.u32 %v424, 2147483648
    %v436 = vsel %vm434, %v435, %v433
    %v437 = vadd.f32 %v422, %v436
    %v438 = vlog2.pop %v437
    %v439 = vmul.f32 %v438, 0.6931472
    %v440 = vsub.f32 0.0, %v439
    %v441 = vmul.f32 %v440, 1.442695
    %v442 = vpow.pop %v441
    %v443 = vadd.f32 %v354, %v442
    %v444 = vperm.slane %v170, 3
    %vm445 = vcmp.eq.s32.totalorder %v97, %v444
    %vm446 = vcmp.eq.s32.totalorder %v98, %v444
    %vm447 = vcmp.eq.s32.totalorder %v99, %v444
    %vm448 = vcmp.eq.s32.totalorder %v100, %v444
    %vm449 = vcmp.eq.s32.totalorder %v101, %v444
    %v450 = vsel %vm445, 1, 0
    %v451 = vsel %vm446, 1, 0
    %v452 = vsel %vm447, 1, 0
    %v453 = vsel %vm448, 1, 0
    %v454 = vsel %vm449, 1, 0
    %v455 = vcvt.s32.f32 %v450
    %v456 = vcvt.s32.f32 %v451
    %v457 = vcvt.s32.f32 %v452
    %v458 = vcvt.s32.f32 %v453
    %v459 = vcvt.s32.f32 %v454
    %v461 = vsel %vm123, %v459, 0
    %463 = vmatpush.msra.mxu0 0.0
    %464 = vmatpush.msra.mxu0 0.0
    %465 = vmatpush.msra.mxu0 0.0
    %466 = vmatpush.msra.mxu0 0.0
    %467 = vmatpush.msra.mxu0 0.0
    %468 = vmatpush.msra.mxu0 0.0
    %469 = vmatpush.msra.mxu0 0.0
    %470 = vmatpush.msra.mxu0 0.0
    %471 = vmatpush.msra.mxu0 0.0
    %472 = vmatpush.msra.mxu0 0.0
    %473 = vmatpush.msra.mxu0 0.0
    %474 = vmatpush.msra.mxu0 %v461
    %475 = vmatpush.msra.mxu0 %v458
    %476 = vmatpush.msra.mxu0 %v457
    %477 = vmatpush.msra.mxu0 %v456
    %478 = vmatpush.msra.mxu0 %v455
    %479 = vmatmul.f32.gmra.mxu0 %v188
    %v480 = vpop.f32.mrf.mxu0
    %v481 = vadd.f32 0.0, %v480
    %482 = vdwg.mxu0
    %483 = vmatpush.msra.mxu0 0.0
    %484 = vmatpush.msra.mxu0 0.0
    %485 = vmatpush.msra.mxu0 0.0
    %486 = vmatpush.msra.mxu0 0.0
    %487 = vmatpush.msra.mxu0 0.0
    %488 = vmatpush.msra.mxu0 0.0
    %489 = vmatpush.msra.mxu0 0.0
    %490 = vmatpush.msra.mxu0 0.0
    %491 = vmatpush.msra.mxu0 0.0
    %492 = vmatpush.msra.mxu0 0.0
    %493 = vmatpush.msra.mxu0 0.0
    %494 = vmatpush.msra.mxu0 %v461
    %495 = vmatpush.msra.mxu0 %v458
    %496 = vmatpush.msra.mxu0 %v457
    %497 = vmatpush.msra.mxu0 %v456
    %498 = vmatpush.msra.mxu0 %v455
    %499 = vmatmul.f32.gmra.mxu0 %v214
    %v500 = vpop.f32.mrf.mxu0
    %v501 = vadd.f32 %v481, %v500
    %502 = vdwg.mxu0
    %v503 = vmul.f32 %v168, %v501
    %v504 = vrot.slane %v503, 4
    %v505 = vadd.f32 %v503, %v504
    %v506 = vrot.slane %v505, 2
    %v507 = vadd.f32 %v505, %v506
    %v508 = vrot.slane %v507, 1
    %v509 = vadd.f32 %v507, %v508
    %vm510 = vcmp.le.f32.partialorder %v509, 1.0
    %v511 = vsel %vm510, 1.000001, %v509
    %v512 = vmul.f32 %v511, %v511
    %v513 = vsub.f32 %v512, 1.0
    %v514 = vrsqrt.pop %v513
    %v515 = vmul.f32 %v514, %v513
    %v516 = vmul.f32 %v515, %v514
    %v517 = vmul.f32 0.5, %v516
    %v518 = vsub.f32 1.5, %v517
    %v519 = vmul.f32 %v514, %v518
    %v520 = vmul.f32 %v513, %v519
    %vm521 = vcmp.eq.f32.partialorder %v513, inf
    %v522 = vsel %vm521, %v513, %v520
    %vm523 = vcmp.eq.f32.partialorder %v513, 0.0
    %v524 = vand.u32 %v513, 2147483648
    %v525 = vsel %vm523, %v524, %v522
    %v526 = vadd.f32 %v511, %v525
    %v527 = vlog2.pop %v526
    %v528 = vmul.f32 %v527, 0.6931472
    %v529 = vsub.f32 0.0, %v528
    %v530 = vmul.f32 %v529, 1.442695
    %v531 = vpow.pop %v530
    %v532 = vadd.f32 %v443, %v531
    %v533 = vadd.f32 %v532, 1e-06
    %v534 = vlog2.pop %v533
    %v535 = vmul.f32 %v534, 0.6931472
    %v536 = vsub.f32 %v535, %v262
    %537 = vst [vmem:[#allocation11] sm:$0x1] %v536
    // Predicated region
    $region46: #{tpu_custom_call.1} parent=1 // pred_check
      _
    $region47: #{tpu_custom_call.1} parent=1 // pred_check_branch
      %539 = sbr.rel (0) target = $region49
    $region48: #{tpu_custom_call.1} parent=1 // pred_region
      %541 = vsyncadd [#allocation4], 0
      %s543 = sshll.u32 [#allocation11], 4
      %s544 = int_to_ptr.vmem [resolvable:$true] %s543
      %s545 = sshll.u32 %s6, 4
      %s546 = int_to_ptr.hbm [resolvable:$true] %s545
      %548 = dma.vmem_to_hbm [thread:$0]  %s544, 16, %s546, [#allocation4]
    $region49: #{tpu_custom_call.1} parent=1 // pred_fallthru
      _
    // Predicated region
    $region50: #{tpu_custom_call.1} parent=1 // pred_check
      _
    $region51: #{tpu_custom_call.1} parent=1 // pred_check_branch
      %550 = sbr.rel (0) target = $region53
    $region52: #{tpu_custom_call.1} parent=1 // pred_region
      %552 = dma.done [#allocation4], 16
    $region53: #{tpu_custom_call.1} parent=1 // pred_fallthru
      _
    %553 = vsyncpa [#allocation3], 1
    %554 = vsyncpa [#allocation6], 1
    %555 = vsyncpa [#allocation9], 1
    %556 = vsyncpa [#allocation4], 1

</llo_original>
